<compile_context>
chip_gen: v7x
topology: tpu7x:2x2x1
jax: 0.10.0
libtpu: 0.0.40
codegen_flags: <defaults>
</compile_context>

<pallas_src>
import jax
import jax.numpy as jnp
from jax import lax
from jax.experimental import pallas as pl
from jax.experimental.pallas import tpu as pltpu


def bilstm_kernel(x_ref, inproj_ref, whh_ref, lin_ref, pred_ref):
    """Whole sequence in one invocation, everything resident in VMEM.

    x_ref:      (T, I)        input sequence (I == 1 for MyLSTM)
    inproj_ref: (2I+1, 8H)    rows [0:I]  = fwd input weights in fwd blocks (0 elsewhere)
                              rows [I:2I] = bwd input weights in bwd blocks (0 elsewhere)
                              row  2I     = combined biases (b_ih+b_hh) for both dirs
    whh_ref:    (2H, 8H)      block-structured recurrent weights
                              (rows 0:H -> fwd blocks, rows H:2H -> bwd blocks)
    lin_ref:    (2, 2H)       row 0 = final linear weight row [w_f | w_b],
                              row 1 lane 0 = final linear bias
    pred_ref:   (T, 1)
    Column-block order (blocks of H lanes): [i_f, i_b, f_f, f_b, o_f, o_b, g_f, g_b].
    """
    T, I = x_ref.shape
    H = whh_ref.shape[1] // 8

    x = x_ref[...]                                   # (T, I)
    w_if = inproj_ref[0:I, :]                        # (I, 8H)
    w_ib = inproj_ref[I:2 * I, :]                    # (I, 8H)
    b_cat = inproj_ref[2 * I:2 * I + 1, :]           # (1, 8H)

    # Hoisted input projections. With I == 1 this is a pure VPU broadcast
    # (no K=1 MXU round trip).  Complementary blocks are zero, so the per-step
    # sum xg_fwd[s] + xg_bwd[T-1-s] assembles the full gate preactivation.
    if I == 1:
        xg_fwd = x * w_if                            # (T, 8H), bwd blocks = 0
        xg_bwd = x * w_ib + b_cat                    # (T, 8H), fwd blocks = bias only
    else:
        xg_fwd = jnp.dot(x, w_if, preferred_element_type=jnp.float32)
        xg_bwd = jnp.dot(x, w_ib, preferred_element_type=jnp.float32) + b_cat

    whh = whh_ref[...]                               # (2H, 8H)

    h_cat = jnp.zeros((1, 2 * H), jnp.float32)       # [h_f | h_b]
    c_cat = jnp.zeros((1, 2 * H), jnp.float32)       # [c_f | c_b]
    hf_list = [None] * T
    hb_list = [None] * T

    # Fully unrolled; iteration s advances fwd chain at time s and bwd chain
    # at time T-1-s, sharing one matmul and one set of nonlinearities.
    for s in range(T):
        t = T - 1 - s
        xg = xg_fwd[s:s + 1, :] + xg_bwd[t:t + 1, :]              # (1, 8H)
        if s == 0:
            gates = xg                                            # h0 == c0 == 0
        else:
            gates = jnp.dot(h_cat, whh,
                            preferred_element_type=jnp.float32) + xg
        sig = jax.nn.sigmoid(gates[:, :6 * H])                    # i,f,o both dirs
        g_cat = jnp.tanh(gates[:, 6 * H:])                        # [g_f | g_b]
        i_cat = sig[:, 0 * H:2 * H]
        f_cat = sig[:, 2 * H:4 * H]
        o_cat = sig[:, 4 * H:6 * H]
        c_cat = f_cat * c_cat + i_cat * g_cat
        h_cat = o_cat * jnp.tanh(c_cat)
        hf_list[s] = h_cat[:, :H]                                 # time s
        hb_list[t] = h_cat[:, H:]                                 # time T-1-s

    hf_all = jnp.concatenate(hf_list, axis=0)                     # (T, H) time-ordered
    hb_all = jnp.concatenate(hb_list, axis=0)                     # (T, H) time-ordered

    # Final linear (O == 1): VPU multiply + XLU lane reduce, no N=1 matmul.
    wl = lin_ref[0:1, :]                                          # (1, 2H)
    b_lin = lin_ref[1:2, 0:1]                                     # (1, 1)
    pred_ref[...] = (
        jnp.sum(hf_all * wl[:, :H], axis=-1, keepdims=True)
        + jnp.sum(hb_all * wl[:, H:], axis=-1, keepdims=True)
        + b_lin)


# Torch gate order is [i, f, g, o]; map (direction, torch_gate) -> column block.
_BLK = {("f", 0): 0, ("b", 0): 1,   # i
        ("f", 1): 2, ("b", 1): 3,   # f
        ("f", 3): 4, ("b", 3): 5,   # o
        ("f", 2): 6, ("b", 2): 7}   # g


def prepare_params(p):
    """One-time host-side packing of torch-shaped params into kernel layout."""
    H = p["w_hh_f"].shape[1]
    I = p["w_ih_f"].shape[1]
    O = p["w_lin"].shape[0]
    assert O == 1, "MyLSTM uses output_size == 1"

    w_if = jnp.zeros((I, 8 * H), jnp.float32)
    w_ib = jnp.zeros((I, 8 * H), jnp.float32)
    b_cat = jnp.zeros((1, 8 * H), jnp.float32)
    whh_bd = jnp.zeros((2 * H, 8 * H), jnp.float32)

    bias_f = p["b_ih_f"] + p["b_hh_f"]
    bias_b = p["b_ih_b"] + p["b_hh_b"]

    for g in range(4):
        bf, bb = _BLK[("f", g)], _BLK[("b", g)]
        rows = slice(g * H, (g + 1) * H)
        w_if = w_if.at[:, bf * H:(bf + 1) * H].set(p["w_ih_f"][rows, :].T)
        w_ib = w_ib.at[:, bb * H:(bb + 1) * H].set(p["w_ih_b"][rows, :].T)
        b_cat = b_cat.at[0, bf * H:(bf + 1) * H].set(bias_f[rows])
        b_cat = b_cat.at[0, bb * H:(bb + 1) * H].set(bias_b[rows])
        whh_bd = whh_bd.at[0:H, bf * H:(bf + 1) * H].set(p["w_hh_f"][rows, :].T)
        whh_bd = whh_bd.at[H:2 * H, bb * H:(bb + 1) * H].set(p["w_hh_b"][rows, :].T)

    inproj = jnp.concatenate([w_if, w_ib, b_cat], axis=0)         # (2I+1, 8H)

    lin = jnp.zeros((2, 2 * H), jnp.float32)
    lin = lin.at[0, :].set(p["w_lin"].reshape(-1))                # [w_f | w_b]
    lin = lin.at[1, 0].set(p["b_lin"][0])

    return {"inproj": inproj, "whh": whh_bd, "lin": lin,
            "H": H, "I": I, "O": O}


def my_lstm_forward(x, prep):
    """Pallas MyLSTM.forward. x: (T,) or (T, I). Returns (T,)."""
    T = x.shape[0]
    x2 = x.reshape(T, -1).astype(jnp.float32)
    assert x2.shape[1] == prep["I"]

    vmem = pl.BlockSpec(memory_space=pltpu.MemorySpace.VMEM)
    pred = pl.pallas_call(
        bilstm_kernel,
        out_shape=jax.ShapeDtypeStruct((T, 1), jnp.float32),
        in_specs=[vmem, vmem, vmem, vmem],
        out_specs=vmem,
    )(x2, prep["inproj"], prep["whh"], prep["lin"])
    return pred.reshape(-1)


def reference_forward(x, p):
    """Pure-JAX reference matching torch.nn.LSTM(bidirectional=True) + Linear."""
    T = x.shape[0]
    x2 = x.reshape(T, -1).astype(jnp.float32)
    H = p["w_hh_f"].shape[1]

    def run_dir(w_ih, w_hh, b_ih, b_hh, reverse):
        def cell(carry, x_t):
            h, c = carry
            gates = x_t @ w_ih.T + h @ w_hh.T + b_ih + b_hh
            i, f, g, o = jnp.split(gates, 4)
            i = jax.nn.sigmoid(i)
            f = jax.nn.sigmoid(f)
            g = jnp.tanh(g)
            o = jax.nn.sigmoid(o)
            c = f * c + i * g
            h = o * jnp.tanh(c)
            return (h, c), h

        xs = x2[::-1] if reverse else x2
        _, hs = lax.scan(cell, (jnp.zeros(H), jnp.zeros(H)), xs)
        return hs[::-1] if reverse else hs

    hf = run_dir(p["w_ih_f"], p["w_hh_f"], p["b_ih_f"], p["b_hh_f"], False)
    hb = run_dir(p["w_ih_b"], p["w_hh_b"], p["b_ih_b"], p["b_hh_b"], True)
    feats = jnp.concatenate([hf, hb], axis=1)
    return (feats @ p["w_lin"].T + p["b_lin"]).reshape(-1)


def init_params(key, input_size, hidden, output_size):
    """Deterministic uniform(-1/sqrt(H), 1/sqrt(H)) init, torch-style shapes."""
    k = 1.0 / jnp.sqrt(hidden)
    names_shapes = [
        ("w_ih_f", (4 * hidden, input_size)), ("w_hh_f", (4 * hidden, hidden)),
        ("b_ih_f", (4 * hidden,)), ("b_hh_f", (4 * hidden,)),
        ("w_ih_b", (4 * hidden, input_size)), ("w_hh_b", (4 * hidden, hidden)),
        ("b_ih_b", (4 * hidden,)), ("b_hh_b", (4 * hidden,)),
        ("w_lin", (output_size, 2 * hidden)), ("b_lin", (output_size,)),
    ]
    keys = jax.random.split(key, len(names_shapes))
    return {n: jax.random.uniform(kk, s, jnp.float32, minval=-k, maxval=k)
            for (n, s), kk in zip(names_shapes, keys)}


if __name__ == "__main__":
    T = 8            # sequence length
    INPUT = 1        # input_size (MyLSTM default)
    HIDDEN = 32      # hidden_layer_size (small, in place of 100)
    OUT = 1          # output_size

    key = jax.random.PRNGKey(0)
    pkey, xkey = jax.random.split(key)
    params = init_params(pkey, INPUT, HIDDEN, OUT)
    prep = prepare_params(params)                      # one-time layout prep
    input_seq = jax.random.normal(xkey, (T,), jnp.float32)

    pred = jax.block_until_ready(my_lstm_forward(input_seq, prep))
    ref = jax.block_until_ready(reference_forward(input_seq, params))

    assert pred.shape == (T,)
    assert jnp.allclose(pred, ref, atol=1e-5, rtol=1e-5), (pred, ref)
    print("KERNEL_OK")
</pallas_src>

<mosaic_0001>
module attributes {stable_mosaic.version = 11 : i64} {
  func.func @bilstm_kernel(%arg0: memref<8x1xf32, #tpu.memory_space<vmem>>, %arg1: memref<3x256xf32, #tpu.memory_space<vmem>>, %arg2: memref<64x256xf32, #tpu.memory_space<vmem>>, %arg3: memref<2x64xf32, #tpu.memory_space<vmem>>, %arg4: memref<8x1xf32, #tpu.memory_space<vmem>>) attributes {dimension_semantics = [], scalar_prefetch = 0 : i64, scratch_operands = 0 : i64, tpu.core_type = #tpu.core_type<tc>} {
    %c0 = arith.constant 0 : index
    %c0_0 = arith.constant 0 : index
    %0 = vector.load %arg0[%c0, %c0_0] : memref<8x1xf32, #tpu.memory_space<vmem>>, vector<8x1xf32>
    %c0_1 = arith.constant 0 : index
    %c0_2 = arith.constant 0 : index
    %1 = vector.load %arg1[%c0_1, %c0_2] : memref<3x256xf32, #tpu.memory_space<vmem>>, vector<1x256xf32>
    %c1 = arith.constant 1 : index
    %c0_3 = arith.constant 0 : index
    %2 = vector.load %arg1[%c1, %c0_3] : memref<3x256xf32, #tpu.memory_space<vmem>>, vector<1x256xf32>
    %c2 = arith.constant 2 : index
    %c0_4 = arith.constant 0 : index
    %3 = vector.load %arg1[%c2, %c0_4] : memref<3x256xf32, #tpu.memory_space<vmem>>, vector<1x256xf32>
    %4 = vector.broadcast %0 : vector<8x1xf32> to vector<8x256xf32>
    %5 = vector.broadcast %1 : vector<1x256xf32> to vector<8x256xf32>
    %6 = arith.mulf %4, %5 : vector<8x256xf32>
    %7 = vector.broadcast %0 : vector<8x1xf32> to vector<8x256xf32>
    %8 = vector.broadcast %2 : vector<1x256xf32> to vector<8x256xf32>
    %9 = arith.mulf %7, %8 : vector<8x256xf32>
    %10 = vector.broadcast %3 : vector<1x256xf32> to vector<8x256xf32>
    %11 = arith.addf %9, %10 : vector<8x256xf32>
    %c0_5 = arith.constant 0 : index
    %c0_6 = arith.constant 0 : index
    %12 = vector.load %arg2[%c0_5, %c0_6] : memref<64x256xf32, #tpu.memory_space<vmem>>, vector<64x256xf32>
    %cst = arith.constant 0.000000e+00 : f32
    %13 = vector.broadcast %cst : f32 to vector<1x64xf32>
    %14 = vector.extract_strided_slice %6 {offsets = [0, 0], sizes = [1, 256], strides = [1, 1]} : vector<8x256xf32> to vector<1x256xf32>
    %15 = vector.extract_strided_slice %11 {offsets = [7, 0], sizes = [1, 256], strides = [1, 1]} : vector<8x256xf32> to vector<1x256xf32>
    %16 = arith.addf %14, %15 : vector<1x256xf32>
    %17 = vector.extract_strided_slice %16 {offsets = [0, 0], sizes = [1, 192], strides = [1, 1]} : vector<1x256xf32> to vector<1x192xf32>
    %18 = arith.negf %17 : vector<1x192xf32>
    %19 = math.exp %18 : vector<1x192xf32>
    %cst_7 = arith.constant 1.000000e+00 : f32
    %20 = vector.broadcast %cst_7 : f32 to vector<1x192xf32>
    %21 = arith.addf %20, %19 : vector<1x192xf32>
    %22 = arith.divf %20, %21 : vector<1x192xf32>
    %23 = vector.extract_strided_slice %16 {offsets = [0, 192], sizes = [1, 64], strides = [1, 1]} : vector<1x256xf32> to vector<1x64xf32>
    %24 = math.tanh %23 : vector<1x64xf32>
    %25 = vector.extract_strided_slice %22 {offsets = [0, 0], sizes = [1, 64], strides = [1, 1]} : vector<1x192xf32> to vector<1x64xf32>
    %26 = vector.extract_strided_slice %22 {offsets = [0, 64], sizes = [1, 64], strides = [1, 1]} : vector<1x192xf32> to vector<1x64xf32>
    %27 = vector.extract_strided_slice %22 {offsets = [0, 128], sizes = [1, 64], strides = [1, 1]} : vector<1x192xf32> to vector<1x64xf32>
    %28 = arith.mulf %26, %13 : vector<1x64xf32>
    %29 = arith.mulf %25, %24 : vector<1x64xf32>
    %30 = arith.addf %28, %29 : vector<1x64xf32>
    %31 = math.tanh %30 : vector<1x64xf32>
    %32 = arith.mulf %27, %31 : vector<1x64xf32>
    %33 = vector.extract_strided_slice %32 {offsets = [0, 0], sizes = [1, 32], strides = [1, 1]} : vector<1x64xf32> to vector<1x32xf32>
    %34 = vector.extract_strided_slice %32 {offsets = [0, 32], sizes = [1, 32], strides = [1, 1]} : vector<1x64xf32> to vector<1x32xf32>
    %35 = vector.extract_strided_slice %6 {offsets = [1, 0], sizes = [1, 256], strides = [1, 1]} : vector<8x256xf32> to vector<1x256xf32>
    %36 = vector.extract_strided_slice %11 {offsets = [6, 0], sizes = [1, 256], strides = [1, 1]} : vector<8x256xf32> to vector<1x256xf32>
    %37 = arith.addf %35, %36 : vector<1x256xf32>
    %cst_8 = arith.constant dense<0.000000e+00> : vector<1x256xf32>
    %38 = tpu.matmul %32, %12, %cst_8 {dimension_numbers = #tpu.dot_dimension_numbers<[1], [0], [0], [1], [0, 0, 1, 1], [], []>} : vector<1x64xf32>, vector<64x256xf32>, vector<1x256xf32> -> vector<1x256xf32>
    %39 = arith.addf %38, %37 : vector<1x256xf32>
    %40 = vector.extract_strided_slice %39 {offsets = [0, 0], sizes = [1, 192], strides = [1, 1]} : vector<1x256xf32> to vector<1x192xf32>
    %41 = arith.negf %40 : vector<1x192xf32>
    %42 = math.exp %41 : vector<1x192xf32>
    %cst_9 = arith.constant 1.000000e+00 : f32
    %43 = vector.broadcast %cst_9 : f32 to vector<1x192xf32>
    %44 = arith.addf %43, %42 : vector<1x192xf32>
    %45 = arith.divf %43, %44 : vector<1x192xf32>
    %46 = vector.extract_strided_slice %39 {offsets = [0, 192], sizes = [1, 64], strides = [1, 1]} : vector<1x256xf32> to vector<1x64xf32>
    %47 = math.tanh %46 : vector<1x64xf32>
    %48 = vector.extract_strided_slice %45 {offsets = [0, 0], sizes = [1, 64], strides = [1, 1]} : vector<1x192xf32> to vector<1x64xf32>
    %49 = vector.extract_strided_slice %45 {offsets = [0, 64], sizes = [1, 64], strides = [1, 1]} : vector<1x192xf32> to vector<1x64xf32>
    %50 = vector.extract_strided_slice %45 {offsets = [0, 128], sizes = [1, 64], strides = [1, 1]} : vector<1x192xf32> to vector<1x64xf32>
    %51 = arith.mulf %49, %30 : vector<1x64xf32>
    %52 = arith.mulf %48, %47 : vector<1x64xf32>
    %53 = arith.addf %51, %52 : vector<1x64xf32>
    %54 = math.tanh %53 : vector<1x64xf32>
    %55 = arith.mulf %50, %54 : vector<1x64xf32>
    %56 = vector.extract_strided_slice %55 {offsets = [0, 0], sizes = [1, 32], strides = [1, 1]} : vector<1x64xf32> to vector<1x32xf32>
    %57 = vector.extract_strided_slice %55 {offsets = [0, 32], sizes = [1, 32], strides = [1, 1]} : vector<1x64xf32> to vector<1x32xf32>
    %58 = vector.extract_strided_slice %6 {offsets = [2, 0], sizes = [1, 256], strides = [1, 1]} : vector<8x256xf32> to vector<1x256xf32>
    %59 = vector.extract_strided_slice %11 {offsets = [5, 0], sizes = [1, 256], strides = [1, 1]} : vector<8x256xf32> to vector<1x256xf32>
    %60 = arith.addf %58, %59 : vector<1x256xf32>
    %cst_10 = arith.constant dense<0.000000e+00> : vector<1x256xf32>
    %61 = tpu.matmul %55, %12, %cst_10 {dimension_numbers = #tpu.dot_dimension_numbers<[1], [0], [0], [1], [0, 0, 1, 1], [], []>} : vector<1x64xf32>, vector<64x256xf32>, vector<1x256xf32> -> vector<1x256xf32>
    %62 = arith.addf %61, %60 : vector<1x256xf32>
    %63 = vector.extract_strided_slice %62 {offsets = [0, 0], sizes = [1, 192], strides = [1, 1]} : vector<1x256xf32> to vector<1x192xf32>
    %64 = arith.negf %63 : vector<1x192xf32>
    %65 = math.exp %64 : vector<1x192xf32>
    %cst_11 = arith.constant 1.000000e+00 : f32
    %66 = vector.broadcast %cst_11 : f32 to vector<1x192xf32>
    %67 = arith.addf %66, %65 : vector<1x192xf32>
    %68 = arith.divf %66, %67 : vector<1x192xf32>
    %69 = vector.extract_strided_slice %62 {offsets = [0, 192], sizes = [1, 64], strides = [1, 1]} : vector<1x256xf32> to vector<1x64xf32>
    %70 = math.tanh %69 : vector<1x64xf32>
    %71 = vector.extract_strided_slice %68 {offsets = [0, 0], sizes = [1, 64], strides = [1, 1]} : vector<1x192xf32> to vector<1x64xf32>
    %72 = vector.extract_strided_slice %68 {offsets = [0, 64], sizes = [1, 64], strides = [1, 1]} : vector<1x192xf32> to vector<1x64xf32>
    %73 = vector.extract_strided_slice %68 {offsets = [0, 128], sizes = [1, 64], strides = [1, 1]} : vector<1x192xf32> to vector<1x64xf32>
    %74 = arith.mulf %72, %53 : vector<1x64xf32>
    %75 = arith.mulf %71, %70 : vector<1x64xf32>
    %76 = arith.addf %74, %75 : vector<1x64xf32>
    %77 = math.tanh %76 : vector<1x64xf32>
    %78 = arith.mulf %73, %77 : vector<1x64xf32>
    %79 = vector.extract_strided_slice %78 {offsets = [0, 0], sizes = [1, 32], strides = [1, 1]} : vector<1x64xf32> to vector<1x32xf32>
    %80 = vector.extract_strided_slice %78 {offsets = [0, 32], sizes = [1, 32], strides = [1, 1]} : vector<1x64xf32> to vector<1x32xf32>
    %81 = vector.extract_strided_slice %6 {offsets = [3, 0], sizes = [1, 256], strides = [1, 1]} : vector<8x256xf32> to vector<1x256xf32>
    %82 = vector.extract_strided_slice %11 {offsets = [4, 0], sizes = [1, 256], strides = [1, 1]} : vector<8x256xf32> to vector<1x256xf32>
    %83 = arith.addf %81, %82 : vector<1x256xf32>
    %cst_12 = arith.constant dense<0.000000e+00> : vector<1x256xf32>
    %84 = tpu.matmul %78, %12, %cst_12 {dimension_numbers = #tpu.dot_dimension_numbers<[1], [0], [0], [1], [0, 0, 1, 1], [], []>} : vector<1x64xf32>, vector<64x256xf32>, vector<1x256xf32> -> vector<1x256xf32>
    %85 = arith.addf %84, %83 : vector<1x256xf32>
    %86 = vector.extract_strided_slice %85 {offsets = [0, 0], sizes = [1, 192], strides = [1, 1]} : vector<1x256xf32> to vector<1x192xf32>
    %87 = arith.negf %86 : vector<1x192xf32>
    %88 = math.exp %87 : vector<1x192xf32>
    %cst_13 = arith.constant 1.000000e+00 : f32
    %89 = vector.broadcast %cst_13 : f32 to vector<1x192xf32>
    %90 = arith.addf %89, %88 : vector<1x192xf32>
    %91 = arith.divf %89, %90 : vector<1x192xf32>
    %92 = vector.extract_strided_slice %85 {offsets = [0, 192], sizes = [1, 64], strides = [1, 1]} : vector<1x256xf32> to vector<1x64xf32>
    %93 = math.tanh %92 : vector<1x64xf32>
    %94 = vector.extract_strided_slice %91 {offsets = [0, 0], sizes = [1, 64], strides = [1, 1]} : vector<1x192xf32> to vector<1x64xf32>
    %95 = vector.extract_strided_slice %91 {offsets = [0, 64], sizes = [1, 64], strides = [1, 1]} : vector<1x192xf32> to vector<1x64xf32>
    %96 = vector.extract_strided_slice %91 {offsets = [0, 128], sizes = [1, 64], strides = [1, 1]} : vector<1x192xf32> to vector<1x64xf32>
    %97 = arith.mulf %95, %76 : vector<1x64xf32>
    %98 = arith.mulf %94, %93 : vector<1x64xf32>
    %99 = arith.addf %97, %98 : vector<1x64xf32>
    %100 = math.tanh %99 : vector<1x64xf32>
    %101 = arith.mulf %96, %100 : vector<1x64xf32>
    %102 = vector.extract_strided_slice %101 {offsets = [0, 0], sizes = [1, 32], strides = [1, 1]} : vector<1x64xf32> to vector<1x32xf32>
    %103 = vector.extract_strided_slice %101 {offsets = [0, 32], sizes = [1, 32], strides = [1, 1]} : vector<1x64xf32> to vector<1x32xf32>
    %104 = vector.extract_strided_slice %6 {offsets = [4, 0], sizes = [1, 256], strides = [1, 1]} : vector<8x256xf32> to vector<1x256xf32>
    %105 = vector.extract_strided_slice %11 {offsets = [3, 0], sizes = [1, 256], strides = [1, 1]} : vector<8x256xf32> to vector<1x256xf32>
    %106 = arith.addf %104, %105 : vector<1x256xf32>
    %cst_14 = arith.constant dense<0.000000e+00> : vector<1x256xf32>
    %107 = tpu.matmul %101, %12, %cst_14 {dimension_numbers = #tpu.dot_dimension_numbers<[1], [0], [0], [1], [0, 0, 1, 1], [], []>} : vector<1x64xf32>, vector<64x256xf32>, vector<1x256xf32> -> vector<1x256xf32>
    %108 = arith.addf %107, %106 : vector<1x256xf32>
    %109 = vector.extract_strided_slice %108 {offsets = [0, 0], sizes = [1, 192], strides = [1, 1]} : vector<1x256xf32> to vector<1x192xf32>
    %110 = arith.negf %109 : vector<1x192xf32>
    %111 = math.exp %110 : vector<1x192xf32>
    %cst_15 = arith.constant 1.000000e+00 : f32
    %112 = vector.broadcast %cst_15 : f32 to vector<1x192xf32>
    %113 = arith.addf %112, %111 : vector<1x192xf32>
    %114 = arith.divf %112, %113 : vector<1x192xf32>
    %115 = vector.extract_strided_slice %108 {offsets = [0, 192], sizes = [1, 64], strides = [1, 1]} : vector<1x256xf32> to vector<1x64xf32>
    %116 = math.tanh %115 : vector<1x64xf32>
    %117 = vector.extract_strided_slice %114 {offsets = [0, 0], sizes = [1, 64], strides = [1, 1]} : vector<1x192xf32> to vector<1x64xf32>
    %118 = vector.extract_strided_slice %114 {offsets = [0, 64], sizes = [1, 64], strides = [1, 1]} : vector<1x192xf32> to vector<1x64xf32>
    %119 = vector.extract_strided_slice %114 {offsets = [0, 128], sizes = [1, 64], strides = [1, 1]} : vector<1x192xf32> to vector<1x64xf32>
    %120 = arith.mulf %118, %99 : vector<1x64xf32>
    %121 = arith.mulf %117, %116 : vector<1x64xf32>
    %122 = arith.addf %120, %121 : vector<1x64xf32>
    %123 = math.tanh %122 : vector<1x64xf32>
    %124 = arith.mulf %119, %123 : vector<1x64xf32>
    %125 = vector.extract_strided_slice %124 {offsets = [0, 0], sizes = [1, 32], strides = [1, 1]} : vector<1x64xf32> to vector<1x32xf32>
    %126 = vector.extract_strided_slice %124 {offsets = [0, 32], sizes = [1, 32], strides = [1, 1]} : vector<1x64xf32> to vector<1x32xf32>
    %127 = vector.extract_strided_slice %6 {offsets = [5, 0], sizes = [1, 256], strides = [1, 1]} : vector<8x256xf32> to vector<1x256xf32>
    %128 = vector.extract_strided_slice %11 {offsets = [2, 0], sizes = [1, 256], strides = [1, 1]} : vector<8x256xf32> to vector<1x256xf32>
    %129 = arith.addf %127, %128 : vector<1x256xf32>
    %cst_16 = arith.constant dense<0.000000e+00> : vector<1x256xf32>
    %130 = tpu.matmul %124, %12, %cst_16 {dimension_numbers = #tpu.dot_dimension_numbers<[1], [0], [0], [1], [0, 0, 1, 1], [], []>} : vector<1x64xf32>, vector<64x256xf32>, vector<1x256xf32> -> vector<1x256xf32>
    %131 = arith.addf %130, %129 : vector<1x256xf32>
    %132 = vector.extract_strided_slice %131 {offsets = [0, 0], sizes = [1, 192], strides = [1, 1]} : vector<1x256xf32> to vector<1x192xf32>
    %133 = arith.negf %132 : vector<1x192xf32>
    %134 = math.exp %133 : vector<1x192xf32>
    %cst_17 = arith.constant 1.000000e+00 : f32
    %135 = vector.broadcast %cst_17 : f32 to vector<1x192xf32>
    %136 = arith.addf %135, %134 : vector<1x192xf32>
    %137 = arith.divf %135, %136 : vector<1x192xf32>
    %138 = vector.extract_strided_slice %131 {offsets = [0, 192], sizes = [1, 64], strides = [1, 1]} : vector<1x256xf32> to vector<1x64xf32>
    %139 = math.tanh %138 : vector<1x64xf32>
    %140 = vector.extract_strided_slice %137 {offsets = [0, 0], sizes = [1, 64], strides = [1, 1]} : vector<1x192xf32> to vector<1x64xf32>
    %141 = vector.extract_strided_slice %137 {offsets = [0, 64], sizes = [1, 64], strides = [1, 1]} : vector<1x192xf32> to vector<1x64xf32>
    %142 = vector.extract_strided_slice %137 {offsets = [0, 128], sizes = [1, 64], strides = [1, 1]} : vector<1x192xf32> to vector<1x64xf32>
    %143 = arith.mulf %141, %122 : vector<1x64xf32>
    %144 = arith.mulf %140, %139 : vector<1x64xf32>
    %145 = arith.addf %143, %144 : vector<1x64xf32>
    %146 = math.tanh %145 : vector<1x64xf32>
    %147 = arith.mulf %142, %146 : vector<1x64xf32>
    %148 = vector.extract_strided_slice %147 {offsets = [0, 0], sizes = [1, 32], strides = [1, 1]} : vector<1x64xf32> to vector<1x32xf32>
    %149 = vector.extract_strided_slice %147 {offsets = [0, 32], sizes = [1, 32], strides = [1, 1]} : vector<1x64xf32> to vector<1x32xf32>
    %150 = vector.extract_strided_slice %6 {offsets = [6, 0], sizes = [1, 256], strides = [1, 1]} : vector<8x256xf32> to vector<1x256xf32>
    %151 = vector.extract_strided_slice %11 {offsets = [1, 0], sizes = [1, 256], strides = [1, 1]} : vector<8x256xf32> to vector<1x256xf32>
    %152 = arith.addf %150, %151 : vector<1x256xf32>
    %cst_18 = arith.constant dense<0.000000e+00> : vector<1x256xf32>
    %153 = tpu.matmul %147, %12, %cst_18 {dimension_numbers = #tpu.dot_dimension_numbers<[1], [0], [0], [1], [0, 0, 1, 1], [], []>} : vector<1x64xf32>, vector<64x256xf32>, vector<1x256xf32> -> vector<1x256xf32>
    %154 = arith.addf %153, %152 : vector<1x256xf32>
    %155 = vector.extract_strided_slice %154 {offsets = [0, 0], sizes = [1, 192], strides = [1, 1]} : vector<1x256xf32> to vector<1x192xf32>
    %156 = arith.negf %155 : vector<1x192xf32>
    %157 = math.exp %156 : vector<1x192xf32>
    %cst_19 = arith.constant 1.000000e+00 : f32
    %158 = vector.broadcast %cst_19 : f32 to vector<1x192xf32>
    %159 = arith.addf %158, %157 : vector<1x192xf32>
    %160 = arith.divf %158, %159 : vector<1x192xf32>
    %161 = vector.extract_strided_slice %154 {offsets = [0, 192], sizes = [1, 64], strides = [1, 1]} : vector<1x256xf32> to vector<1x64xf32>
    %162 = math.tanh %161 : vector<1x64xf32>
    %163 = vector.extract_strided_slice %160 {offsets = [0, 0], sizes = [1, 64], strides = [1, 1]} : vector<1x192xf32> to vector<1x64xf32>
    %164 = vector.extract_strided_slice %160 {offsets = [0, 64], sizes = [1, 64], strides = [1, 1]} : vector<1x192xf32> to vector<1x64xf32>
    %165 = vector.extract_strided_slice %160 {offsets = [0, 128], sizes = [1, 64], strides = [1, 1]} : vector<1x192xf32> to vector<1x64xf32>
    %166 = arith.mulf %164, %145 : vector<1x64xf32>
    %167 = arith.mulf %163, %162 : vector<1x64xf32>
    %168 = arith.addf %166, %167 : vector<1x64xf32>
    %169 = math.tanh %168 : vector<1x64xf32>
    %170 = arith.mulf %165, %169 : vector<1x64xf32>
    %171 = vector.extract_strided_slice %170 {offsets = [0, 0], sizes = [1, 32], strides = [1, 1]} : vector<1x64xf32> to vector<1x32xf32>
    %172 = vector.extract_strided_slice %170 {offsets = [0, 32], sizes = [1, 32], strides = [1, 1]} : vector<1x64xf32> to vector<1x32xf32>
    %173 = vector.extract_strided_slice %6 {offsets = [7, 0], sizes = [1, 256], strides = [1, 1]} : vector<8x256xf32> to vector<1x256xf32>
    %174 = vector.extract_strided_slice %11 {offsets = [0, 0], sizes = [1, 256], strides = [1, 1]} : vector<8x256xf32> to vector<1x256xf32>
    %175 = arith.addf %173, %174 : vector<1x256xf32>
    %cst_20 = arith.constant dense<0.000000e+00> : vector<1x256xf32>
    %176 = tpu.matmul %170, %12, %cst_20 {dimension_numbers = #tpu.dot_dimension_numbers<[1], [0], [0], [1], [0, 0, 1, 1], [], []>} : vector<1x64xf32>, vector<64x256xf32>, vector<1x256xf32> -> vector<1x256xf32>
    %177 = arith.addf %176, %175 : vector<1x256xf32>
    %178 = vector.extract_strided_slice %177 {offsets = [0, 0], sizes = [1, 192], strides = [1, 1]} : vector<1x256xf32> to vector<1x192xf32>
    %179 = arith.negf %178 : vector<1x192xf32>
    %180 = math.exp %179 : vector<1x192xf32>
    %cst_21 = arith.constant 1.000000e+00 : f32
    %181 = vector.broadcast %cst_21 : f32 to vector<1x192xf32>
    %182 = arith.addf %181, %180 : vector<1x192xf32>
    %183 = arith.divf %181, %182 : vector<1x192xf32>
    %184 = vector.extract_strided_slice %177 {offsets = [0, 192], sizes = [1, 64], strides = [1, 1]} : vector<1x256xf32> to vector<1x64xf32>
    %185 = math.tanh %184 : vector<1x64xf32>
    %186 = vector.extract_strided_slice %183 {offsets = [0, 0], sizes = [1, 64], strides = [1, 1]} : vector<1x192xf32> to vector<1x64xf32>
    %187 = vector.extract_strided_slice %183 {offsets = [0, 64], sizes = [1, 64], strides = [1, 1]} : vector<1x192xf32> to vector<1x64xf32>
    %188 = vector.extract_strided_slice %183 {offsets = [0, 128], sizes = [1, 64], strides = [1, 1]} : vector<1x192xf32> to vector<1x64xf32>
    %189 = arith.mulf %187, %168 : vector<1x64xf32>
    %190 = arith.mulf %186, %185 : vector<1x64xf32>
    %191 = arith.addf %189, %190 : vector<1x64xf32>
    %192 = math.tanh %191 : vector<1x64xf32>
    %193 = arith.mulf %188, %192 : vector<1x64xf32>
    %194 = vector.extract_strided_slice %193 {offsets = [0, 0], sizes = [1, 32], strides = [1, 1]} : vector<1x64xf32> to vector<1x32xf32>
    %195 = vector.extract_strided_slice %193 {offsets = [0, 32], sizes = [1, 32], strides = [1, 1]} : vector<1x64xf32> to vector<1x32xf32>
    %196 = tpu.concatenate %33, %56, %79, %102, %125, %148, %171, %194 in 0 : vector<1x32xf32>, vector<1x32xf32>, vector<1x32xf32>, vector<1x32xf32>, vector<1x32xf32>, vector<1x32xf32>, vector<1x32xf32>, vector<1x32xf32> -> vector<8x32xf32>
    %197 = tpu.concatenate %195, %172, %149, %126, %103, %80, %57, %34 in 0 : vector<1x32xf32>, vector<1x32xf32>, vector<1x32xf32>, vector<1x32xf32>, vector<1x32xf32>, vector<1x32xf32>, vector<1x32xf32>, vector<1x32xf32> -> vector<8x32xf32>
    %c0_22 = arith.constant 0 : index
    %c0_23 = arith.constant 0 : index
    %198 = vector.load %arg3[%c0_22, %c0_23] : memref<2x64xf32, #tpu.memory_space<vmem>>, vector<1x64xf32>
    %c1_24 = arith.constant 1 : index
    %c0_25 = arith.constant 0 : index
    %199 = vector.load %arg3[%c1_24, %c0_25] : memref<2x64xf32, #tpu.memory_space<vmem>>, vector<1x1xf32>
    %200 = vector.extract_strided_slice %198 {offsets = [0, 0], sizes = [1, 32], strides = [1, 1]} : vector<1x64xf32> to vector<1x32xf32>
    %201 = vector.broadcast %200 : vector<1x32xf32> to vector<8x32xf32>
    %202 = arith.mulf %196, %201 : vector<8x32xf32>
    %cst_26 = arith.constant dense<0.000000e+00> : vector<8xf32>
    %203 = vector.multi_reduction <add>, %202, %cst_26 [1] : vector<8x32xf32> to vector<8xf32>
    %204 = vector.shape_cast %203 : vector<8xf32> to vector<8x1xf32>
    %205 = vector.extract_strided_slice %198 {offsets = [0, 32], sizes = [1, 32], strides = [1, 1]} : vector<1x64xf32> to vector<1x32xf32>
    %206 = vector.broadcast %205 : vector<1x32xf32> to vector<8x32xf32>
    %207 = arith.mulf %197, %206 : vector<8x32xf32>
    %cst_27 = arith.constant dense<0.000000e+00> : vector<8xf32>
    %208 = vector.multi_reduction <add>, %207, %cst_27 [1] : vector<8x32xf32> to vector<8xf32>
    %209 = vector.shape_cast %208 : vector<8xf32> to vector<8x1xf32>
    %210 = arith.addf %204, %209 : vector<8x1xf32>
    %211 = vector.broadcast %199 : vector<1x1xf32> to vector<8x1xf32>
    %212 = arith.addf %210, %211 : vector<8x1xf32>
    %c0_28 = arith.constant 0 : index
    %c0_29 = arith.constant 0 : index
    %213 = vector.load %arg4[%c0_28, %c0_29] : memref<8x1xf32, #tpu.memory_space<vmem>>, vector<8x1xf32>
    tpu.vector_store %arg4[%c0_28, %c0_29], %212 {strides = array<i32>} : memref<8x1xf32, #tpu.memory_space<vmem>>, vector<8x1xf32>,
    return
  }
}

</mosaic_0001>

<llo_original>
// kernel: tpu_custom_call.1
$region0: #{tpu_custom_call.1}
  #allocation0 [shape = 'u32[]', space=smem, size = 0x4, offset = 0x4, fixed_abs, tag = 'smem constant byte address 0x4 - core index']
  #allocation1 [shape = 'u32[144,128]{1,0:T(1,128)}', space=vmem, size = 0x12000, scoped, tag = 'internal scratch']
  %s0 = inlined_call_operand.vmem [shape: f32[8,1], index: 0, kind: input, shape index: {}]
  %s1 = inlined_call_operand.vmem [shape: f32[3,256], index: 1, kind: input, shape index: {}]
  %s2 = inlined_call_operand.hbm [shape: f32[64,256], index: 2, kind: input, shape index: {}]
  %s3 = inlined_call_operand.vmem [shape: f32[2,64], index: 3, kind: input, shape index: {}]
  %s4 = inlined_call_operand.vmem [shape: f32[8,1], index: 4, kind: output, shape index: {}]
  %s5 = sld [smem:[#allocation0]]
  $region30: #{tpu_custom_call.1} parent=0
    _
  %s7 = ssub.s32 1, %s5
  %s8 = scalar_select 0, %s7, %s5
  $region1: #{tpu_custom_call.1} parent=0
    #allocation2 [shape = 'u8[65536]{0}', space=vmem, size = 0x10000, scoped, tag = 'input window, operand 2, single buffered']
    #allocation3 [shape = 's32[1]{0}', space=sflag, size = 0x4, scoped, tag = 'scoped memory for tpu_custom_call.1']
    %9 = vsyncpa [#allocation3], 0
    // Predicated region
    $region2: #{tpu_custom_call.1} parent=1 // pred_check
      _
    $region3: #{tpu_custom_call.1} parent=1 // pred_check_branch
      %11 = sbr.rel (0) target = $region5
    $region4: #{tpu_custom_call.1} parent=1 // pred_region
      _
    $region5: #{tpu_custom_call.1} parent=1 // pred_fallthru
      _
    // Predicated region
    $region6: #{tpu_custom_call.1} parent=1 // pred_check
      _
    $region7: #{tpu_custom_call.1} parent=1 // pred_check_branch
      %13 = sbr.rel (0) target = $region9
    $region8: #{tpu_custom_call.1} parent=1 // pred_region
      _
    $region9: #{tpu_custom_call.1} parent=1 // pred_fallthru
      _
    // Predicated region
    $region10: #{tpu_custom_call.1} parent=1 // pred_check
      _
    $region11: #{tpu_custom_call.1} parent=1 // pred_check_branch
      %15 = sbr.rel (0) target = $region13
    $region12: #{tpu_custom_call.1} parent=1 // pred_region
      %s17 = ssub.s32 2048, 2048
      %18 = vsyncadd [#allocation3], %s17
      %s19 = sshll.u32 [#allocation2], 4
      %s20 = int_to_ptr.vmem [resolvable:$true] %s19
      %25 = dma.hbm_to_vmem [thread:$0]  %s2, 2048, %s20, [#allocation3], 256, 256, 16
    $region13: #{tpu_custom_call.1} parent=1 // pred_fallthru
      _
    // Predicated region
    $region14: #{tpu_custom_call.1} parent=1 // pred_check
      _
    $region15: #{tpu_custom_call.1} parent=1 // pred_check_branch
      %27 = sbr.rel (0) target = $region17
    $region16: #{tpu_custom_call.1} parent=1 // pred_region
      _
    $region17: #{tpu_custom_call.1} parent=1 // pred_fallthru
      _
    // Predicated region
    $region18: #{tpu_custom_call.1} parent=1 // pred_check
      _
    $region19: #{tpu_custom_call.1} parent=1 // pred_check_branch
      %29 = sbr.rel (0) target = $region21
    $region20: #{tpu_custom_call.1} parent=1 // pred_region
      %30 = dma.done [#allocation3], 2048
    $region21: #{tpu_custom_call.1} parent=1 // pred_fallthru
      _
    %v31 = vld [vmem:[%s0] sm:$0xff]
    %v32 = vld [vmem:[%s1] ss:$4 sm:$0x3]
    %s33 = scalar_lea.vmem %s1, 1
    %v34 = vld [vmem:[%s33] ss:$4 sm:$0x3]
    %s35 = scalar_lea.vmem %s1, 2
    %v36 = vld [vmem:[%s35] ss:$4 sm:$0x3]
    %38 = vset.pattern.permute.xlu0 0
    %39 = vperm.xlu0 %38, %v31
    %v40 = vpop.permute.xlu0 %39
    %v43 = vlaneseq
    %v44 = vshrl.u32 %v43, 7
    %v45 = vsub.s32 0, %v44
    %v46 = vrot.slane %v32, %v45
    %v47 = vlaneseq
    %v48 = vshrl.u32 %v47, 7
    %v49 = vsub.s32 1, %v48
    %v50 = vrot.slane %v32, %v49
    %v53 = vmul.f32 %v40, %v46
    %v54 = vmul.f32 %v40, %v50
    %v56 = vlaneseq
    %v57 = vshrl.u32 %v56, 7
    %v58 = vsub.s32 0, %v57
    %v59 = vrot.slane %v34, %v58
    %v60 = vlaneseq
    %v61 = vshrl.u32 %v60, 7
    %v62 = vsub.s32 1, %v61
    %v63 = vrot.slane %v34, %v62
    %v66 = vmul.f32 %v40, %v59
    %v67 = vmul.f32 %v40, %v63
    %v69 = vlaneseq
    %v70 = vshrl.u32 %v69, 7
    %v71 = vsub.s32 0, %v70
    %v72 = vrot.slane %v36, %v71
    %v73 = vlaneseq
    %v74 = vshrl.u32 %v73, 7
    %v75 = vsub.s32 1, %v74
    %v76 = vrot.slane %v36, %v75
    %v79 = vadd.f32 %v66, %v72
    %v80 = vadd.f32 %v67, %v76
    %v81 = vld [vmem:[#allocation2] sm:$0xff]
    %v82 = vld [vmem:[#allocation2 + $0x8] sm:$0xff]
    %v83 = vld [vmem:[#allocation2 + $0x10] sm:$0xff]
    %v84 = vld [vmem:[#allocation2 + $0x18] sm:$0xff]
    %v85 = vld [vmem:[#allocation2 + $0x20] sm:$0xff]
    %v86 = vld [vmem:[#allocation2 + $0x28] sm:$0xff]
    %v87 = vld [vmem:[#allocation2 + $0x30] sm:$0xff]
    %v88 = vld [vmem:[#allocation2 + $0x38] sm:$0xff]
    %v89 = vld [vmem:[#allocation2 + $0x40] sm:$0xff]
    %v90 = vld [vmem:[#allocation2 + $0x48] sm:$0xff]
    %v91 = vld [vmem:[#allocation2 + $0x50] sm:$0xff]
    %v92 = vld [vmem:[#allocation2 + $0x58] sm:$0xff]
    %v93 = vld [vmem:[#allocation2 + $0x60] sm:$0xff]
    %v94 = vld [vmem:[#allocation2 + $0x68] sm:$0xff]
    %v95 = vld [vmem:[#allocation2 + $0x70] sm:$0xff]
    %v96 = vld [vmem:[#allocation2 + $0x78] sm:$0xff]
    %v99 = vrot.slane %v79, 7
    %v100 = vrot.slane %v80, 7
    %v103 = vadd.f32 %v53, %v99
    %v104 = vadd.f32 %v54, %v100
    %v105 = vxor.u32 %v103, 2147483648
    %v106 = vxor.u32 %v104, 2147483648
    %v107 = vmul.f32 %v105, 1.442695
    %v108 = vpow.pop %v107
    %v109 = vmul.f32 %v106, 1.442695
    %v110 = vpow.pop %v109
    %v111 = vadd.f32 %v108, 1.0
    %v112 = vadd.f32 %v110, 1.0
    %v113 = vrcp.pop %v111
    %v114 = vmul.f32 1.0, %v113
    %v115 = vrcp.pop %v112
    %v116 = vmul.f32 1.0, %v115
    %v117 = vtanh.pop %v104
    %v118 = vmul.f32 %v114, 0.0
    %120 = vrot.lane.b32.xlu0 %v117, 64
    %v121 = vpop.permute.xlu0 %120
    %v123 = vmul.f32 %v114, %v121
    %125 = vrot.lane.b32.xlu0 %v123, 64
    %v126 = vpop.permute.xlu0 %125
    %v128 = vadd.f32 %v118, %v126
    %v129 = vtanh.pop %v128
    %131 = vrot.lane.b32.xlu0 %v129, 64
    %v132 = vpop.permute.xlu0 %131
    %v134 = vmul.f32 %v116, %v132
    %v135 = vrot.slane %v79, 5
    %v136 = vrot.slane %v80, 5
    %v139 = vadd.f32 %v53, %v135
    %v140 = vadd.f32 %v54, %v136
    %v143 = vrot.slane %v139, 1
    %v144 = vrot.slane %v140, 1
    %vm147 = vcmask 523264
    %v149 = vsel %vm147, %v134, 0
    %151 = vmatprep.subr.mxu0 %v82
    %152 = vmatpush1.msra.mxu0 %v81
    %153 = vmatprep.subr.mxu0 %v84
    %154 = vmatpush1.msra.mxu0 %v83
    %155 = vmatprep.subr.mxu0 %v86
    %156 = vmatpush1.msra.mxu0 %v85
    %157 = vmatprep.subr.mxu0 %v88
    %158 = vmatpush1.msra.mxu0 %v87
    %159 = vmatprep.subr.mxu0 %v90
    %160 = vmatpush1.msra.mxu0 %v89
    %161 = vmatprep.subr.mxu0 %v92
    %162 = vmatpush1.msra.mxu0 %v91
    %163 = vmatprep.subr.mxu0 %v94
    %164 = vmatpush1.msra.mxu0 %v93
    %165 = vmatprep.subr.mxu0 %v96
    %166 = vmatpush1.msra.mxu0 %v95
    %167 = vmatprep.subr.mxu0 0.0
    %168 = vmatpush1.msra.mxu0 0.0
    %169 = vmatprep.subr.mxu0 0.0
    %170 = vmatpush1.msra.mxu0 0.0
    %171 = vmatprep.subr.mxu0 0.0
    %172 = vmatpush1.msra.mxu0 0.0
    %173 = vmatprep.subr.mxu0 0.0
    %174 = vmatpush1.msra.mxu0 0.0
    %175 = vmatprep.subr.mxu0 0.0
    %176 = vmatpush1.msra.mxu0 0.0
    %177 = vmatprep.subr.mxu0 0.0
    %178 = vmatpush1.msra.mxu0 0.0
    %179 = vmatprep.subr.mxu0 0.0
    %180 = vmatpush1.msra.mxu0 0.0
    %181 = vmatprep.subr.mxu0 0.0
    %182 = vmatpush1.msra.mxu0 0.0
    %183 = vmatprep.subr.mxu0 0.0
    %184 = vmatpush1.msra.mxu0 0.0
    %185 = vmatprep.subr.mxu0 0.0
    %186 = vmatpush1.msra.mxu0 0.0
    %187 = vmatprep.subr.mxu0 0.0
    %188 = vmatpush1.msra.mxu0 0.0
    %189 = vmatprep.subr.mxu0 0.0
    %190 = vmatpush1.msra.mxu0 0.0
    %191 = vmatprep.subr.mxu0 0.0
    %192 = vmatpush1.msra.mxu0 0.0
    %193 = vmatprep.subr.mxu0 0.0
    %194 = vmatpush1.msra.mxu0 0.0
    %195 = vmatprep.subr.mxu0 0.0
    %196 = vmatpush1.msra.mxu0 0.0
    %197 = vmatprep.subr.mxu0 0.0
    %198 = vmatpush1.msra.mxu0 0.0
    %199 = vmatprep.subr.mxu0 0.0
    %200 = vmatpush1.msra.mxu0 0.0
    %201 = vmatprep.subr.mxu0 0.0
    %202 = vmatpush1.msra.mxu0 0.0
    %203 = vmatprep.subr.mxu0 0.0
    %204 = vmatpush1.msra.mxu0 0.0
    %205 = vmatprep.subr.mxu0 0.0
    %206 = vmatpush1.msra.mxu0 0.0
    %207 = vmatprep.subr.mxu0 0.0
    %208 = vmatpush1.msra.mxu0 0.0
    %209 = vmatprep.subr.mxu0 0.0
    %210 = vmatpush1.msra.mxu0 0.0
    %211 = vmatprep.subr.mxu0 0.0
    %212 = vmatpush1.msra.mxu0 0.0
    %213 = vmatprep.subr.mxu0 0.0
    %214 = vmatpush1.msra.mxu0 0.0
    %215 = vmatprep.mubr.f32.mxu0 0.0
    %216 = vmatmul.mubr.f32.gmra.mrb[0].mxu0 %v149
    %v217 = vpop.f32.mrb[0].mxu0
    %v218 = vadd.f32 %v143, %v217
    %v219 = vpop.f32.mrb[0].mxu0
    %v220 = vadd.f32 %v144, %v219
    %221 = vdwg.mxu0
    %v222 = vxor.u32 %v218, 2147483648
    %v223 = vxor.u32 %v220, 2147483648
    %v224 = vmul.f32 %v222, 1.442695
    %v225 = vpow.pop %v224
    %v226 = vmul.f32 %v223, 1.442695
    %v227 = vpow.pop %v226
    %v228 = vadd.f32 %v225, 1.0
    %v229 = vadd.f32 %v227, 1.0
    %v230 = vrcp.pop %v228
    %v231 = vmul.f32 1.0, %v230
    %v232 = vrcp.pop %v229
    %v233 = vmul.f32 1.0, %v232
    %v234 = vtanh.pop %v220
    %v235 = vmul.f32 %v231, %v128
    %237 = vrot.lane.b32.xlu0 %v234, 64
    %v238 = vpop.permute.xlu0 %237
    %v240 = vmul.f32 %v231, %v238
    %242 = vrot.lane.b32.xlu0 %v240, 64
    %v243 = vpop.permute.xlu0 %242
    %v245 = vadd.f32 %v235, %v243
    %v246 = vtanh.pop %v245
    %248 = vrot.lane.b32.xlu0 %v246, 64
    %v249 = vpop.permute.xlu0 %248
    %v251 = vmul.f32 %v233, %v249
    %v252 = vrot.slane %v79, 3
    %v253 = vrot.slane %v80, 3
    %v256 = vadd.f32 %v53, %v252
    %v257 = vadd.f32 %v54, %v253
    %v260 = vrot.slane %v256, 2
    %v261 = vrot.slane %v257, 2
    %v265 = vsel %vm147, %v251, 0
    %267 = vmatprep.subr.mxu0 %v82
    %268 = vmatpush1.msra.mxu0 %v81
    %269 = vmatprep.subr.mxu0 %v84
    %270 = vmatpush1.msra.mxu0 %v83
    %271 = vmatprep.subr.mxu0 %v86
    %272 = vmatpush1.msra.mxu0 %v85
    %273 = vmatprep.subr.mxu0 %v88
    %274 = vmatpush1.msra.mxu0 %v87
    %275 = vmatprep.subr.mxu0 %v90
    %276 = vmatpush1.msra.mxu0 %v89
    %277 = vmatprep.subr.mxu0 %v92
    %278 = vmatpush1.msra.mxu0 %v91
    %279 = vmatprep.subr.mxu0 %v94
    %280 = vmatpush1.msra.mxu0 %v93
    %281 = vmatprep.subr.mxu0 %v96
    %282 = vmatpush1.msra.mxu0 %v95
    %283 = vmatprep.subr.mxu0 0.0
    %284 = vmatpush1.msra.mxu0 0.0
    %285 = vmatprep.subr.mxu0 0.0
    %286 = vmatpush1.msra.mxu0 0.0
    %287 = vmatprep.subr.mxu0 0.0
    %288 = vmatpush1.msra.mxu0 0.0
    %289 = vmatprep.subr.mxu0 0.0
    %290 = vmatpush1.msra.mxu0 0.0
    %291 = vmatprep.subr.mxu0 0.0
    %292 = vmatpush1.msra.mxu0 0.0
    %293 = vmatprep.subr.mxu0 0.0
    %294 = vmatpush1.msra.mxu0 0.0
    %295 = vmatprep.subr.mxu0 0.0
    %296 = vmatpush1.msra.mxu0 0.0
    %297 = vmatprep.subr.mxu0 0.0
    %298 = vmatpush1.msra.mxu0 0.0
    %299 = vmatprep.subr.mxu0 0.0
    %300 = vmatpush1.msra.mxu0 0.0
    %301 = vmatprep.subr.mxu0 0.0
    %302 = vmatpush1.msra.mxu0 0.0
    %303 = vmatprep.subr.mxu0 0.0
    %304 = vmatpush1.msra.mxu0 0.0
    %305 = vmatprep.subr.mxu0 0.0
    %306 = vmatpush1.msra.mxu0 0.0
    %307 = vmatprep.subr.mxu0 0.0
    %308 = vmatpush1.msra.mxu0 0.0
    %309 = vmatprep.subr.mxu0 0.0
    %310 = vmatpush1.msra.mxu0 0.0
    %311 = vmatprep.subr.mxu0 0.0
    %312 = vmatpush1.msra.mxu0 0.0
    %313 = vmatprep.subr.mxu0 0.0
    %314 = vmatpush1.msra.mxu0 0.0
    %315 = vmatprep.subr.mxu0 0.0
    %316 = vmatpush1.msra.mxu0 0.0
    %317 = vmatprep.subr.mxu0 0.0
    %318 = vmatpush1.msra.mxu0 0.0
    %319 = vmatprep.subr.mxu0 0.0
    %320 = vmatpush1.msra.mxu0 0.0
    %321 = vmatprep.subr.mxu0 0.0
    %322 = vmatpush1.msra.mxu0 0.0
    %323 = vmatprep.subr.mxu0 0.0
    %324 = vmatpush1.msra.mxu0 0.0
    %325 = vmatprep.subr.mxu0 0.0
    %326 = vmatpush1.msra.mxu0 0.0
    %327 = vmatprep.subr.mxu0 0.0
    %328 = vmatpush1.msra.mxu0 0.0
    %329 = vmatprep.subr.mxu0 0.0
    %330 = vmatpush1.msra.mxu0 0.0
    %331 = vmatprep.mubr.f32.mxu0 0.0
    %332 = vmatmul.mubr.f32.gmra.mrb[0].mxu0 %v265
    %v333 = vpop.f32.mrb[0].mxu0
    %v334 = vadd.f32 %v260, %v333
    %v335 = vpop.f32.mrb[0].mxu0
    %v336 = vadd.f32 %v261, %v335
    %337 = vdwg.mxu0
    %v338 = vxor.u32 %v334, 2147483648
    %v339 = vxor.u32 %v336, 2147483648
    %v340 = vmul.f32 %v338, 1.442695
    %v341 = vpow.pop %v340
    %v342 = vmul.f32 %v339, 1.442695
    %v343 = vpow.pop %v342
    %v344 = vadd.f32 %v341, 1.0
    %v345 = vadd.f32 %v343, 1.0
    %v346 = vrcp.pop %v344
    %v347 = vmul.f32 1.0, %v346
    %v348 = vrcp.pop %v345
    %v349 = vmul.f32 1.0, %v348
    %v350 = vtanh.pop %v336
    %v351 = vmul.f32 %v347, %v245
    %353 = vrot.lane.b32.xlu0 %v350, 64
    %v354 = vpop.permute.xlu0 %353
    %v356 = vmul.f32 %v347, %v354
    %358 = vrot.lane.b32.xlu0 %v356, 64
    %v359 = vpop.permute.xlu0 %358
    %v361 = vadd.f32 %v351, %v359
    %v362 = vtanh.pop %v361
    %364 = vrot.lane.b32.xlu0 %v362, 64
    %v365 = vpop.permute.xlu0 %364
    %v367 = vmul.f32 %v349, %v365
    %v368 = vrot.slane %v79, 1
    %v369 = vrot.slane %v80, 1
    %v372 = vadd.f32 %v53, %v368
    %v373 = vadd.f32 %v54, %v369
    %v376 = vrot.slane %v372, 3
    %v377 = vrot.slane %v373, 3
    %v381 = vsel %vm147, %v367, 0
    %383 = vmatprep.subr.mxu0 %v82
    %384 = vmatpush1.msra.mxu0 %v81
    %385 = vmatprep.subr.mxu0 %v84
    %386 = vmatpush1.msra.mxu0 %v83
    %387 = vmatprep.subr.mxu0 %v86
    %388 = vmatpush1.msra.mxu0 %v85
    %389 = vmatprep.subr.mxu0 %v88
    %390 = vmatpush1.msra.mxu0 %v87
    %391 = vmatprep.subr.mxu0 %v90
    %392 = vmatpush1.msra.mxu0 %v89
    %393 = vmatprep.subr.mxu0 %v92
    %394 = vmatpush1.msra.mxu0 %v91
    %395 = vmatprep.subr.mxu0 %v94
    %396 = vmatpush1.msra.mxu0 %v93
    %397 = vmatprep.subr.mxu0 %v96
    %398 = vmatpush1.msra.mxu0 %v95
    %399 = vmatprep.subr.mxu0 0.0
    %400 = vmatpush1.msra.mxu0 0.0
    %401 = vmatprep.subr.mxu0 0.0
    %402 = vmatpush1.msra.mxu0 0.0
    %403 = vmatprep.subr.mxu0 0.0
    %404 = vmatpush1.msra.mxu0 0.0
    %405 = vmatprep.subr.mxu0 0.0
    %406 = vmatpush1.msra.mxu0 0.0
    %407 = vmatprep.subr.mxu0 0.0
    %408 = vmatpush1.msra.mxu0 0.0
    %409 = vmatprep.subr.mxu0 0.0
    %410 = vmatpush1.msra.mxu0 0.0
    %411 = vmatprep.subr.mxu0 0.0
    %412 = vmatpush1.msra.mxu0 0.0
    %413 = vmatprep.subr.mxu0 0.0
    %414 = vmatpush1.msra.mxu0 0.0
    %415 = vmatprep.subr.mxu0 0.0
    %416 = vmatpush1.msra.mxu0 0.0
    %417 = vmatprep.subr.mxu0 0.0
    %418 = vmatpush1.msra.mxu0 0.0
    %419 = vmatprep.subr.mxu0 0.0
    %420 = vmatpush1.msra.mxu0 0.0
    %421 = vmatprep.subr.mxu0 0.0
    %422 = vmatpush1.msra.mxu0 0.0
    %423 = vmatprep.subr.mxu0 0.0
    %424 = vmatpush1.msra.mxu0 0.0
    %425 = vmatprep.subr.mxu0 0.0
    %426 = vmatpush1.msra.mxu0 0.0
    %427 = vmatprep.subr.mxu0 0.0
    %428 = vmatpush1.msra.mxu0 0.0
    %429 = vmatprep.subr.mxu0 0.0
    %430 = vmatpush1.msra.mxu0 0.0
    %431 = vmatprep.subr.mxu0 0.0
    %432 = vmatpush1.msra.mxu0 0.0
    %433 = vmatprep.subr.mxu0 0.0
    %434 = vmatpush1.msra.mxu0 0.0
    %435 = vmatprep.subr.mxu0 0.0
    %436 = vmatpush1.msra.mxu0 0.0
    %437 = vmatprep.subr.mxu0 0.0
    %438 = vmatpush1.msra.mxu0 0.0
    %439 = vmatprep.subr.mxu0 0.0
    %440 = vmatpush1.msra.mxu0 0.0
    %441 = vmatprep.subr.mxu0 0.0
    %442 = vmatpush1.msra.mxu0 0.0
    %443 = vmatprep.subr.mxu0 0.0
    %444 = vmatpush1.msra.mxu0 0.0
    %445 = vmatprep.subr.mxu0 0.0
    %446 = vmatpush1.msra.mxu0 0.0
    %447 = vmatprep.mubr.f32.mxu0 0.0
    %448 = vmatmul.mubr.f32.gmra.mrb[0].mxu0 %v381
    %v449 = vpop.f32.mrb[0].mxu0
    %v450 = vadd.f32 %v376, %v449
    %v451 = vpop.f32.mrb[0].mxu0
    %v452 = vadd.f32 %v377, %v451
    %453 = vdwg.mxu0
    %v454 = vxor.u32 %v450, 2147483648
    %v455 = vxor.u32 %v452, 2147483648
    %v456 = vmul.f32 %v454, 1.442695
    %v457 = vpow.pop %v456
    %v458 = vmul.f32 %v455, 1.442695
    %v459 = vpow.pop %v458
    %v460 = vadd.f32 %v457, 1.0
    %v461 = vadd.f32 %v459, 1.0
    %v462 = vrcp.pop %v460
    %v463 = vmul.f32 1.0, %v462
    %v464 = vrcp.pop %v461
    %v465 = vmul.f32 1.0, %v464
    %v466 = vtanh.pop %v452
    %v467 = vmul.f32 %v463, %v361
    %469 = vrot.lane.b32.xlu0 %v466, 64
    %v470 = vpop.permute.xlu0 %469
    %v472 = vmul.f32 %v463, %v470
    %474 = vrot.lane.b32.xlu0 %v472, 64
    %v475 = vpop.permute.xlu0 %474
    %v477 = vadd.f32 %v467, %v475
    %v478 = vtanh.pop %v477
    %480 = vrot.lane.b32.xlu0 %v478, 64
    %v481 = vpop.permute.xlu0 %480
    %v483 = vmul.f32 %v465, %v481
    %v486 = vrot.slane %v103, 4
    %v487 = vrot.slane %v104, 4
    %v491 = vsel %vm147, %v483, 0
    %493 = vmatprep.subr.mxu0 %v82
    %494 = vmatpush1.msra.mxu0 %v81
    %495 = vmatprep.subr.mxu0 %v84
    %496 = vmatpush1.msra.mxu0 %v83
    %497 = vmatprep.subr.mxu0 %v86
    %498 = vmatpush1.msra.mxu0 %v85
    %499 = vmatprep.subr.mxu0 %v88
    %500 = vmatpush1.msra.mxu0 %v87
    %501 = vmatprep.subr.mxu0 %v90
    %502 = vmatpush1.msra.mxu0 %v89
    %503 = vmatprep.subr.mxu0 %v92
    %504 = vmatpush1.msra.mxu0 %v91
    %505 = vmatprep.subr.mxu0 %v94
    %506 = vmatpush1.msra.mxu0 %v93
    %507 = vmatprep.subr.mxu0 %v96
    %508 = vmatpush1.msra.mxu0 %v95
    %509 = vmatprep.subr.mxu0 0.0
    %510 = vmatpush1.msra.mxu0 0.0
    %511 = vmatprep.subr.mxu0 0.0
    %512 = vmatpush1.msra.mxu0 0.0
    %513 = vmatprep.subr.mxu0 0.0
    %514 = vmatpush1.msra.mxu0 0.0
    %515 = vmatprep.subr.mxu0 0.0
    %516 = vmatpush1.msra.mxu0 0.0
    %517 = vmatprep.subr.mxu0 0.0
    %518 = vmatpush1.msra.mxu0 0.0
    %519 = vmatprep.subr.mxu0 0.0
    %520 = vmatpush1.msra.mxu0 0.0
    %521 = vmatprep.subr.mxu0 0.0
    %522 = vmatpush1.msra.mxu0 0.0
    %523 = vmatprep.subr.mxu0 0.0
    %524 = vmatpush1.msra.mxu0 0.0
    %525 = vmatprep.subr.mxu0 0.0
    %526 = vmatpush1.msra.mxu0 0.0
    %527 = vmatprep.subr.mxu0 0.0
    %528 = vmatpush1.msra.mxu0 0.0
    %529 = vmatprep.subr.mxu0 0.0
    %530 = vmatpush1.msra.mxu0 0.0
    %531 = vmatprep.subr.mxu0 0.0
    %532 = vmatpush1.msra.mxu0 0.0
    %533 = vmatprep.subr.mxu0 0.0
    %534 = vmatpush1.msra.mxu0 0.0
    %535 = vmatprep.subr.mxu0 0.0
    %536 = vmatpush1.msra.mxu0 0.0
    %537 = vmatprep.subr.mxu0 0.0
    %538 = vmatpush1.msra.mxu0 0.0
    %539 = vmatprep.subr.mxu0 0.0
    %540 = vmatpush1.msra.mxu0 0.0
    %541 = vmatprep.subr.mxu0 0.0
    %542 = vmatpush1.msra.mxu0 0.0
    %543 = vmatprep.subr.mxu0 0.0
    %544 = vmatpush1.msra.mxu0 0.0
    %545 = vmatprep.subr.mxu0 0.0
    %546 = vmatpush1.msra.mxu0 0.0
    %547 = vmatprep.subr.mxu0 0.0
    %548 = vmatpush1.msra.mxu0 0.0
    %549 = vmatprep.subr.mxu0 0.0
    %550 = vmatpush1.msra.mxu0 0.0
    %551 = vmatprep.subr.mxu0 0.0
    %552 = vmatpush1.msra.mxu0 0.0
    %553 = vmatprep.subr.mxu0 0.0
    %554 = vmatpush1.msra.mxu0 0.0
    %555 = vmatprep.subr.mxu0 0.0
    %556 = vmatpush1.msra.mxu0 0.0
    %557 = vmatprep.mubr.f32.mxu0 0.0
    %558 = vmatmul.mubr.f32.gmra.mrb[0].mxu0 %v491
    %v559 = vpop.f32.mrb[0].mxu0
    %v560 = vadd.f32 %v486, %v559
    %v561 = vpop.f32.mrb[0].mxu0
    %v562 = vadd.f32 %v487, %v561
    %563 = vdwg.mxu0
    %v564 = vxor.u32 %v560, 2147483648
    %v565 = vxor.u32 %v562, 2147483648
    %v566 = vmul.f32 %v564, 1.442695
    %v567 = vpow.pop %v566
    %v568 = vmul.f32 %v565, 1.442695
    %v569 = vpow.pop %v568
    %v570 = vadd.f32 %v567, 1.0
    %v571 = vadd.f32 %v569, 1.0
    %v572 = vrcp.pop %v570
    %v573 = vmul.f32 1.0, %v572
    %v574 = vrcp.pop %v571
    %v575 = vmul.f32 1.0, %v574
    %v576 = vtanh.pop %v562
    %v577 = vmul.f32 %v573, %v477
    %579 = vrot.lane.b32.xlu0 %v576, 64
    %v580 = vpop.permute.xlu0 %579
    %v582 = vmul.f32 %v573, %v580
    %584 = vrot.lane.b32.xlu0 %v582, 64
    %v585 = vpop.permute.xlu0 %584
    %v587 = vadd.f32 %v577, %v585
    %v588 = vtanh.pop %v587
    %590 = vrot.lane.b32.xlu0 %v588, 64
    %v591 = vpop.permute.xlu0 %590
    %v593 = vmul.f32 %v575, %v591
    %v594 = vrot.slane %v139, 5
    %v595 = vrot.slane %v140, 5
    %v599 = vsel %vm147, %v593, 0
    %601 = vmatprep.subr.mxu0 %v82
    %602 = vmatpush1.msra.mxu0 %v81
    %603 = vmatprep.subr.mxu0 %v84
    %604 = vmatpush1.msra.mxu0 %v83
    %605 = vmatprep.subr.mxu0 %v86
    %606 = vmatpush1.msra.mxu0 %v85
    %607 = vmatprep.subr.mxu0 %v88
    %608 = vmatpush1.msra.mxu0 %v87
    %609 = vmatprep.subr.mxu0 %v90
    %610 = vmatpush1.msra.mxu0 %v89
    %611 = vmatprep.subr.mxu0 %v92
    %612 = vmatpush1.msra.mxu0 %v91
    %613 = vmatprep.subr.mxu0 %v94
    %614 = vmatpush1.msra.mxu0 %v93
    %615 = vmatprep.subr.mxu0 %v96
    %616 = vmatpush1.msra.mxu0 %v95
    %617 = vmatprep.subr.mxu0 0.0
    %618 = vmatpush1.msra.mxu0 0.0
    %619 = vmatprep.subr.mxu0 0.0
    %620 = vmatpush1.msra.mxu0 0.0
    %621 = vmatprep.subr.mxu0 0.0
    %622 = vmatpush1.msra.mxu0 0.0
    %623 = vmatprep.subr.mxu0 0.0
    %624 = vmatpush1.msra.mxu0 0.0
    %625 = vmatprep.subr.mxu0 0.0
    %626 = vmatpush1.msra.mxu0 0.0
    %627 = vmatprep.subr.mxu0 0.0
    %628 = vmatpush1.msra.mxu0 0.0
    %629 = vmatprep.subr.mxu0 0.0
    %630 = vmatpush1.msra.mxu0 0.0
    %631 = vmatprep.subr.mxu0 0.0
    %632 = vmatpush1.msra.mxu0 0.0
    %633 = vmatprep.subr.mxu0 0.0
    %634 = vmatpush1.msra.mxu0 0.0
    %635 = vmatprep.subr.mxu0 0.0
    %636 = vmatpush1.msra.mxu0 0.0
    %637 = vmatprep.subr.mxu0 0.0
    %638 = vmatpush1.msra.mxu0 0.0
    %639 = vmatprep.subr.mxu0 0.0
    %640 = vmatpush1.msra.mxu0 0.0
    %641 = vmatprep.subr.mxu0 0.0
    %642 = vmatpush1.msra.mxu0 0.0
    %643 = vmatprep.subr.mxu0 0.0
    %644 = vmatpush1.msra.mxu0 0.0
    %645 = vmatprep.subr.mxu0 0.0
    %646 = vmatpush1.msra.mxu0 0.0
    %647 = vmatprep.subr.mxu0 0.0
    %648 = vmatpush1.msra.mxu0 0.0
    %649 = vmatprep.subr.mxu0 0.0
    %650 = vmatpush1.msra.mxu0 0.0
    %651 = vmatprep.subr.mxu0 0.0
    %652 = vmatpush1.msra.mxu0 0.0
    %653 = vmatprep.subr.mxu0 0.0
    %654 = vmatpush1.msra.mxu0 0.0
    %655 = vmatprep.subr.mxu0 0.0
    %656 = vmatpush1.msra.mxu0 0.0
    %657 = vmatprep.subr.mxu0 0.0
    %658 = vmatpush1.msra.mxu0 0.0
    %659 = vmatprep.subr.mxu0 0.0
    %660 = vmatpush1.msra.mxu0 0.0
    %661 = vmatprep.subr.mxu0 0.0
    %662 = vmatpush1.msra.mxu0 0.0
    %663 = vmatprep.subr.mxu0 0.0
    %664 = vmatpush1.msra.mxu0 0.0
    %665 = vmatprep.mubr.f32.mxu0 0.0
    %666 = vmatmul.mubr.f32.gmra.mrb[0].mxu0 %v599
    %v667 = vpop.f32.mrb[0].mxu0
    %v668 = vadd.f32 %v594, %v667
    %v669 = vpop.f32.mrb[0].mxu0
    %v670 = vadd.f32 %v595, %v669
    %671 = vdwg.mxu0
    %v672 = vxor.u32 %v668, 2147483648
    %v673 = vxor.u32 %v670, 2147483648
    %v674 = vmul.f32 %v672, 1.442695
    %v675 = vpow.pop %v674
    %v676 = vmul.f32 %v673, 1.442695
    %v677 = vpow.pop %v676
    %v678 = vadd.f32 %v675, 1.0
    %v679 = vadd.f32 %v677, 1.0
    %v680 = vrcp.pop %v678
    %v681 = vmul.f32 1.0, %v680
    %v682 = vrcp.pop %v679
    %v683 = vmul.f32 1.0, %v682
    %v684 = vtanh.pop %v670
    %v685 = vmul.f32 %v681, %v587
    %687 = vrot.lane.b32.xlu0 %v684, 64
    %v688 = vpop.permute.xlu0 %687
    %v690 = vmul.f32 %v681, %v688
    %692 = vrot.lane.b32.xlu0 %v690, 64
    %v693 = vpop.permute.xlu0 %692
    %v695 = vadd.f32 %v685, %v693
    %v696 = vtanh.pop %v695
    %698 = vrot.lane.b32.xlu0 %v696, 64
    %v699 = vpop.permute.xlu0 %698
    %v701 = vmul.f32 %v683, %v699
    %v702 = vrot.slane %v256, 6
    %v703 = vrot.slane %v257, 6
    %v707 = vsel %vm147, %v701, 0
    %709 = vmatprep.subr.mxu0 %v82
    %710 = vmatpush1.msra.mxu0 %v81
    %711 = vmatprep.subr.mxu0 %v84
    %712 = vmatpush1.msra.mxu0 %v83
    %713 = vmatprep.subr.mxu0 %v86
    %714 = vmatpush1.msra.mxu0 %v85
    %715 = vmatprep.subr.mxu0 %v88
    %716 = vmatpush1.msra.mxu0 %v87
    %717 = vmatprep.subr.mxu0 %v90
    %718 = vmatpush1.msra.mxu0 %v89
    %719 = vmatprep.subr.mxu0 %v92
    %720 = vmatpush1.msra.mxu0 %v91
    %721 = vmatprep.subr.mxu0 %v94
    %722 = vmatpush1.msra.mxu0 %v93
    %723 = vmatprep.subr.mxu0 %v96
    %724 = vmatpush1.msra.mxu0 %v95
    %725 = vmatprep.subr.mxu0 0.0
    %726 = vmatpush1.msra.mxu0 0.0
    %727 = vmatprep.subr.mxu0 0.0
    %728 = vmatpush1.msra.mxu0 0.0
    %729 = vmatprep.subr.mxu0 0.0
    %730 = vmatpush1.msra.mxu0 0.0
    %731 = vmatprep.subr.mxu0 0.0
    %732 = vmatpush1.msra.mxu0 0.0
    %733 = vmatprep.subr.mxu0 0.0
    %734 = vmatpush1.msra.mxu0 0.0
    %735 = vmatprep.subr.mxu0 0.0
    %736 = vmatpush1.msra.mxu0 0.0
    %737 = vmatprep.subr.mxu0 0.0
    %738 = vmatpush1.msra.mxu0 0.0
    %739 = vmatprep.subr.mxu0 0.0
    %740 = vmatpush1.msra.mxu0 0.0
    %741 = vmatprep.subr.mxu0 0.0
    %742 = vmatpush1.msra.mxu0 0.0
    %743 = vmatprep.subr.mxu0 0.0
    %744 = vmatpush1.msra.mxu0 0.0
    %745 = vmatprep.subr.mxu0 0.0
    %746 = vmatpush1.msra.mxu0 0.0
    %747 = vmatprep.subr.mxu0 0.0
    %748 = vmatpush1.msra.mxu0 0.0
    %749 = vmatprep.subr.mxu0 0.0
    %750 = vmatpush1.msra.mxu0 0.0
    %751 = vmatprep.subr.mxu0 0.0
    %752 = vmatpush1.msra.mxu0 0.0
    %753 = vmatprep.subr.mxu0 0.0
    %754 = vmatpush1.msra.mxu0 0.0
    %755 = vmatprep.subr.mxu0 0.0
    %756 = vmatpush1.msra.mxu0 0.0
    %757 = vmatprep.subr.mxu0 0.0
    %758 = vmatpush1.msra.mxu0 0.0
    %759 = vmatprep.subr.mxu0 0.0
    %760 = vmatpush1.msra.mxu0 0.0
    %761 = vmatprep.subr.mxu0 0.0
    %762 = vmatpush1.msra.mxu0 0.0
    %763 = vmatprep.subr.mxu0 0.0
    %764 = vmatpush1.msra.mxu0 0.0
    %765 = vmatprep.subr.mxu0 0.0
    %766 = vmatpush1.msra.mxu0 0.0
    %767 = vmatprep.subr.mxu0 0.0
    %768 = vmatpush1.msra.mxu0 0.0
    %769 = vmatprep.subr.mxu0 0.0
    %770 = vmatpush1.msra.mxu0 0.0
    %771 = vmatprep.subr.mxu0 0.0
    %772 = vmatpush1.msra.mxu0 0.0
    %773 = vmatprep.mubr.f32.mxu0 0.0
    %774 = vmatmul.mubr.f32.gmra.mrb[0].mxu0 %v707
    %v775 = vpop.f32.mrb[0].mxu0
    %v776 = vadd.f32 %v702, %v775
    %v777 = vpop.f32.mrb[0].mxu0
    %v778 = vadd.f32 %v703, %v777
    %779 = vdwg.mxu0
    %v780 = vxor.u32 %v776, 2147483648
    %v781 = vxor.u32 %v778, 2147483648
    %v782 = vmul.f32 %v780, 1.442695
    %v783 = vpow.pop %v782
    %v784 = vmul.f32 %v781, 1.442695
    %v785 = vpow.pop %v784
    %v786 = vadd.f32 %v783, 1.0
    %v787 = vadd.f32 %v785, 1.0
    %v788 = vrcp.pop %v786
    %v789 = vmul.f32 1.0, %v788
    %v790 = vrcp.pop %v787
    %v791 = vmul.f32 1.0, %v790
    %v792 = vtanh.pop %v778
    %v793 = vmul.f32 %v789, %v695
    %795 = vrot.lane.b32.xlu0 %v792, 64
    %v796 = vpop.permute.xlu0 %795
    %v798 = vmul.f32 %v789, %v796
    %800 = vrot.lane.b32.xlu0 %v798, 64
    %v801 = vpop.permute.xlu0 %800
    %v803 = vadd.f32 %v793, %v801
    %v804 = vtanh.pop %v803
    %806 = vrot.lane.b32.xlu0 %v804, 64
    %v807 = vpop.permute.xlu0 %806
    %v809 = vmul.f32 %v791, %v807
    %v810 = vrot.slane %v372, 7
    %v811 = vrot.slane %v373, 7
    %v815 = vsel %vm147, %v809, 0
    %817 = vmatprep.subr.mxu0 %v82
    %818 = vmatpush1.msra.mxu0 %v81
    %819 = vmatprep.subr.mxu0 %v84
    %820 = vmatpush1.msra.mxu0 %v83
    %821 = vmatprep.subr.mxu0 %v86
    %822 = vmatpush1.msra.mxu0 %v85
    %823 = vmatprep.subr.mxu0 %v88
    %824 = vmatpush1.msra.mxu0 %v87
    %825 = vmatprep.subr.mxu0 %v90
    %826 = vmatpush1.msra.mxu0 %v89
    %827 = vmatprep.subr.mxu0 %v92
    %828 = vmatpush1.msra.mxu0 %v91
    %829 = vmatprep.subr.mxu0 %v94
    %830 = vmatpush1.msra.mxu0 %v93
    %831 = vmatprep.subr.mxu0 %v96
    %832 = vmatpush1.msra.mxu0 %v95
    %833 = vmatprep.subr.mxu0 0.0
    %834 = vmatpush1.msra.mxu0 0.0
    %835 = vmatprep.subr.mxu0 0.0
    %836 = vmatpush1.msra.mxu0 0.0
    %837 = vmatprep.subr.mxu0 0.0
    %838 = vmatpush1.msra.mxu0 0.0
    %839 = vmatprep.subr.mxu0 0.0
    %840 = vmatpush1.msra.mxu0 0.0
    %841 = vmatprep.subr.mxu0 0.0
    %842 = vmatpush1.msra.mxu0 0.0
    %843 = vmatprep.subr.mxu0 0.0
    %844 = vmatpush1.msra.mxu0 0.0
    %845 = vmatprep.subr.mxu0 0.0
    %846 = vmatpush1.msra.mxu0 0.0
    %847 = vmatprep.subr.mxu0 0.0
    %848 = vmatpush1.msra.mxu0 0.0
    %849 = vmatprep.subr.mxu0 0.0
    %850 = vmatpush1.msra.mxu0 0.0
    %851 = vmatprep.subr.mxu0 0.0
    %852 = vmatpush1.msra.mxu0 0.0
    %853 = vmatprep.subr.mxu0 0.0
    %854 = vmatpush1.msra.mxu0 0.0
    %855 = vmatprep.subr.mxu0 0.0
    %856 = vmatpush1.msra.mxu0 0.0
    %857 = vmatprep.subr.mxu0 0.0
    %858 = vmatpush1.msra.mxu0 0.0
    %859 = vmatprep.subr.mxu0 0.0
    %860 = vmatpush1.msra.mxu0 0.0
    %861 = vmatprep.subr.mxu0 0.0
    %862 = vmatpush1.msra.mxu0 0.0
    %863 = vmatprep.subr.mxu0 0.0
    %864 = vmatpush1.msra.mxu0 0.0
    %865 = vmatprep.subr.mxu0 0.0
    %866 = vmatpush1.msra.mxu0 0.0
    %867 = vmatprep.subr.mxu0 0.0
    %868 = vmatpush1.msra.mxu0 0.0
    %869 = vmatprep.subr.mxu0 0.0
    %870 = vmatpush1.msra.mxu0 0.0
    %871 = vmatprep.subr.mxu0 0.0
    %872 = vmatpush1.msra.mxu0 0.0
    %873 = vmatprep.subr.mxu0 0.0
    %874 = vmatpush1.msra.mxu0 0.0
    %875 = vmatprep.subr.mxu0 0.0
    %876 = vmatpush1.msra.mxu0 0.0
    %877 = vmatprep.subr.mxu0 0.0
    %878 = vmatpush1.msra.mxu0 0.0
    %879 = vmatprep.subr.mxu0 0.0
    %880 = vmatpush1.msra.mxu0 0.0
    %881 = vmatprep.mubr.f32.mxu0 0.0
    %882 = vmatmul.mubr.f32.gmra.mrb[0].mxu0 %v815
    %v883 = vpop.f32.mrb[0].mxu0
    %v884 = vadd.f32 %v810, %v883
    %v885 = vpop.f32.mrb[0].mxu0
    %v886 = vadd.f32 %v811, %v885
    %887 = vdwg.mxu0
    %v888 = vxor.u32 %v884, 2147483648
    %v889 = vxor.u32 %v886, 2147483648
    %v890 = vmul.f32 %v888, 1.442695
    %v891 = vpow.pop %v890
    %v892 = vmul.f32 %v889, 1.442695
    %v893 = vpow.pop %v892
    %v894 = vadd.f32 %v891, 1.0
    %v895 = vadd.f32 %v893, 1.0
    %v896 = vrcp.pop %v894
    %v897 = vmul.f32 1.0, %v896
    %v898 = vrcp.pop %v895
    %v899 = vmul.f32 1.0, %v898
    %v900 = vtanh.pop %v886
    %v901 = vmul.f32 %v897, %v803
    %903 = vrot.lane.b32.xlu0 %v900, 64
    %v904 = vpop.permute.xlu0 %903
    %v906 = vmul.f32 %v897, %v904
    %908 = vrot.lane.b32.xlu0 %v906, 64
    %v909 = vpop.permute.xlu0 %908
    %v911 = vadd.f32 %v901, %v909
    %v912 = vtanh.pop %v911
    %914 = vrot.lane.b32.xlu0 %v912, 64
    %v915 = vpop.permute.xlu0 %914
    %v917 = vmul.f32 %v899, %v915
    %v918 = vrot.slane %v251, 7
    %v920 = vrot.slane %v367, 6
    %v922 = vrot.slane %v483, 5
    %v924 = vrot.slane %v593, 4
    %v926 = vrot.slane %v701, 3
    %v928 = vrot.slane %v809, 2
    %v931 = vrot.slane %v917, 1
    %vm933 = vcmask 1040384
    %v934 = vsel %vm933, %v134, %v918
    %vm935 = vcmask 1041408
    %v936 = vsel %vm935, %v934, %v920
    %vm937 = vcmask 1042432
    %v938 = vsel %vm937, %v936, %v922
    %vm939 = vcmask 1043456
    %v940 = vsel %vm939, %v938, %v924
    %vm941 = vcmask 1044480
    %v942 = vsel %vm941, %v940, %v926
    %vm943 = vcmask 1045504
    %v944 = vsel %vm943, %v942, %v928
    %vm945 = vcmask 1046528
    %v946 = vsel %vm945, %v944, %v931
    %v947 = vrot.slane %v809, 7
    %v949 = vrot.slane %v701, 6
    %v951 = vrot.slane %v593, 5
    %v953 = vrot.slane %v483, 4
    %v955 = vrot.slane %v367, 3
    %v957 = vrot.slane %v251, 2
    %v959 = vrot.slane %v134, 1
    %v961 = vsel %vm933, %v917, %v947
    %v962 = vsel %vm935, %v961, %v949
    %v963 = vsel %vm937, %v962, %v951
    %v964 = vsel %vm939, %v963, %v953
    %v965 = vsel %vm941, %v964, %v955
    %v966 = vsel %vm943, %v965, %v957
    %v967 = vsel %vm945, %v966, %v959
    %v968 = vld [vmem:[%s3] sm:$0x1]
    %v969 = vld [vmem:[%s3 + $0x1] sm:$0x1]
    %v970 = vlaneseq
    %v971 = vshrl.u32 %v970, 7
    %v972 = vsub.s32 0, %v971
    %v973 = vrot.slane %v968, %v972
    %v974 = vmul.f32 %v946, %v973
    %vm975 = vcmask 261120
    %v976 = vsel %vm975, %v974, 0.0
    %977 = vadd.xlane.f32.xlu0 %v976
    %v978 = vpop.xlane.xlu0 %977
    %v979 = vmul.f32 %v967, %v973
    %981 = vrot.lane.b32.xlu0 %v979, 96
    %v982 = vpop.permute.xlu0 %981
    %v984 = vsel %vm975, %v982, 0.0
    %985 = vadd.xlane.f32.xlu0 %v984
    %v986 = vpop.xlane.xlu0 %985
    %v987 = vadd.f32 %v978, %v986
    %v988 = vlaneseq
    %v989 = vshrl.u32 %v988, 7
    %v990 = vsub.s32 0, %v989
    %v991 = vrot.slane %v969, %v990
    %v992 = vadd.f32 %v987, %v991
    %vm993 = vcmask 7168
    %994 = vst.msk [vmem:[%s4] sm:$0xff] %vm993, %v992
    // Predicated region
    $region22: #{tpu_custom_call.1} parent=1 // pred_check
      _
    $region23: #{tpu_custom_call.1} parent=1 // pred_check_branch
      %996 = sbr.rel (0) target = $region25
    $region24: #{tpu_custom_call.1} parent=1 // pred_region
      _
    $region25: #{tpu_custom_call.1} parent=1 // pred_fallthru
      _
    // Predicated region
    $region26: #{tpu_custom_call.1} parent=1 // pred_check
      _
    $region27: #{tpu_custom_call.1} parent=1 // pred_check_branch
      %998 = sbr.rel (0) target = $region29
    $region28: #{tpu_custom_call.1} parent=1 // pred_region
      _
    $region29: #{tpu_custom_call.1} parent=1 // pred_fallthru
      _
    %999 = vsyncpa [#allocation3], 1

</llo_original>
